<compile_context>
chip_gen: v5e
topology: v5e:2x2
jax: 0.10.0
libtpu: 0.0.40
codegen_flags: <defaults>
</compile_context>

<pallas_src>
import functools

import jax
import jax.numpy as jnp
from jax.experimental import pallas as pl
from jax.experimental.pallas import tpu as pltpu


def _label_smoothing_kernel(pred_ref, tgt_ref, *rest, num_classes, smoothing,
                            has_weights):
    if has_weights:
        w_ref, out_ref = rest
    else:
        (out_ref,) = rest

    # In-kernel widen: the DMA moved the narrow dtype, the VPU casts for free.
    x = pred_ref[...].astype(jnp.float32)            # (tile_b, C)
    t = tgt_ref[...]                                 # (tile_b, 1) int32
    tb, C = x.shape

    # log_softmax along the class (lane) axis.
    m = jnp.max(x, axis=1, keepdims=True)            # XLU lane reduce
    shifted = x - m
    lse = jnp.log(jnp.sum(jnp.exp(shifted), axis=1, keepdims=True))  # EUP + XLU
    logp = shifted - lse                             # (tile_b, C)

    wlogp = logp * w_ref[...] if has_weights else logp

    confidence = 1.0 - smoothing
    off = smoothing / (num_classes - 1) if num_classes > 1 else 0.0

    # -sum_c true_dist[c] * w[c] * logp[c]
    #   = -( off * sum_c wlogp[c] + (confidence - off) * wlogp[target] )
    cols = jax.lax.broadcasted_iota(jnp.int32, (tb, C), 1)
    row_sum = jnp.sum(wlogp, axis=1, keepdims=True)                    # (tb, 1)
    tgt_val = jnp.sum(jnp.where(cols == t, wlogp, 0.0),
                      axis=1, keepdims=True)                           # (tb, 1)
    out_ref[...] = -(off * row_sum + (confidence - off) * tgt_val)


def _round_up(x, m):
    return ((x + m - 1) // m) * m


def _choose_tile_b(B, C, f32_tile_budget_bytes=2 * 1024 * 1024):
    """Largest batch tile whose f32 working set stays within a per-tile budget
    (chosen so double-buffered inputs + intermediates also fit v7x's 64 MiB
    VMEM), without grossly over-padding tiny batches."""
    t = max(8, f32_tile_budget_bytes // (C * 4))      # rows that fit the budget
    t = min((t // 8) * 8, 2048)                        # sublane multiple, capped
    t = min(t, _round_up(B, 8))                        # don't pad tiny batches
    return max(t, 8)


def label_smoothing_loss(pred, target, *, num_classes, smoothing=0.0,
                         reduction='mean', class_weights=None):
    """JAX/Pallas equivalent of LabelSmoothingLoss.forward (dim=1).

    pred:   (B, C) float array (any float dtype; cast happens in-kernel)
    target: (B,)   integer array of class indices
    Returns a scalar for reduction='mean', and (matching the PyTorch module)
    the per-sample loss vector of shape (B,) for reduction='sum'.
    """
    assert 0 <= smoothing < 1
    assert reduction in ('sum', 'mean')
    B, C = pred.shape
    assert C == num_classes

    tile_b = _choose_tile_b(B, C)
    n_tiles = pl.cdiv(B, tile_b)
    B_pad = n_tiles * tile_b

    tgt = target.reshape(B, 1).astype(jnp.int32)
    if B_pad != B:
        # Padded rows produce finite garbage losses and are sliced off below.
        pred = jnp.pad(pred, ((0, B_pad - B), (0, 0)))
        tgt = jnp.pad(tgt, ((0, B_pad - B), (0, 0)))

    has_weights = class_weights is not None
    kernel = functools.partial(_label_smoothing_kernel,
                               num_classes=num_classes,
                               smoothing=float(smoothing),
                               has_weights=has_weights)

    in_specs = [
        pl.BlockSpec((tile_b, C), lambda i: (i, 0)),   # pred tile
        pl.BlockSpec((tile_b, 1), lambda i: (i, 0)),   # target tile
    ]
    args = [pred, tgt]
    if has_weights:
        w = jnp.asarray(class_weights, jnp.float32).reshape(1, C)
        in_specs.append(pl.BlockSpec((1, C), lambda i: (0, 0)))  # resident
        args.append(w)

    persample = pl.pallas_call(
        kernel,
        grid=(n_tiles,),
        out_shape=jax.ShapeDtypeStruct((B_pad, 1), jnp.float32),
        in_specs=in_specs,
        out_specs=pl.BlockSpec((tile_b, 1), lambda i: (i, 0)),
        compiler_params=pltpu.CompilerParams(
            dimension_semantics=("parallel",),          # megacore / v7x 2-TC
            vmem_limit_bytes=48 * 1024 * 1024),
    )(*args)

    persample = persample[:B, 0]                        # drop padded rows
    if reduction == 'sum':
        # PyTorch module returns the per-sample vector for reduction='sum'.
        return persample
    return jnp.mean(persample)                          # global B, not tile B


def _reference(pred, target, *, num_classes, smoothing, reduction,
               class_weights=None):
    logp = jax.nn.log_softmax(pred.astype(jnp.float32), axis=1)
    confidence = 1.0 - smoothing
    off = smoothing / (num_classes - 1)
    true_dist = jnp.full((pred.shape[0], num_classes), off, jnp.float32)
    true_dist = true_dist.at[jnp.arange(pred.shape[0]), target].set(confidence)
    mult = -true_dist * logp
    if class_weights is not None:
        summed = mult @ jnp.asarray(class_weights, jnp.float32).reshape(num_classes)
    else:
        summed = jnp.sum(mult, axis=1)
    return summed if reduction == 'sum' else jnp.mean(summed)


if __name__ == "__main__":
    B, C = 8, 32
    smoothing = 0.1

    key = jax.random.PRNGKey(0)
    k_pred, k_tgt = jax.random.split(key)
    pred_f32 = jax.random.normal(k_pred, (B, C), dtype=jnp.float32)
    target = jax.random.randint(k_tgt, (B,), 0, C, dtype=jnp.int32)

    # 1) reduction='mean', no class weights (default module config), f32 input.
    out = label_smoothing_loss(pred_f32, target, num_classes=C,
                               smoothing=smoothing, reduction='mean')
    out = jax.block_until_ready(out)
    ref = _reference(pred_f32, target, num_classes=C, smoothing=smoothing,
                     reduction='mean')
    assert jnp.allclose(out, ref, atol=2e-5, rtol=1e-5), (out, ref)

    # 2) bf16 input: kernel DMAs bf16 and widens in-VMEM.
    pred_bf16 = pred_f32.astype(jnp.bfloat16)
    out_b = label_smoothing_loss(pred_bf16, target, num_classes=C,
                                 smoothing=smoothing, reduction='mean')
    out_b = jax.block_until_ready(out_b)
    ref_b = _reference(pred_bf16, target, num_classes=C, smoothing=smoothing,
                       reduction='mean')
    assert jnp.allclose(out_b, ref_b, atol=2e-5, rtol=1e-5), (out_b, ref_b)

    # 3) reduction='sum' (per-sample vector) with explicit class weights.
    cw = jnp.linspace(0.5, 1.5, C, dtype=jnp.float32)
    out2 = label_smoothing_loss(pred_f32, target, num_classes=C,
                                smoothing=smoothing, reduction='sum',
                                class_weights=cw)
    out2 = jax.block_until_ready(out2)
    ref2 = _reference(pred_f32, target, num_classes=C, smoothing=smoothing,
                      reduction='sum', class_weights=cw)
    assert out2.shape == (B,)
    assert jnp.allclose(out2, ref2, atol=2e-5, rtol=1e-5), (out2, ref2)

    print("KERNEL_OK")
</pallas_src>

<mosaic_0001>
module attributes {stable_mosaic.version = 11 : i64} {
  func.func @_label_smoothing_kernel(%arg0: i32, %arg1: memref<8x32xf32, #tpu.memory_space<vmem>>, %arg2: memref<8x1xi32, #tpu.memory_space<vmem>>, %arg3: memref<8x1xf32, #tpu.memory_space<vmem>>) attributes {dimension_semantics = [#tpu.dimension_semantics<parallel>], iteration_bounds = array<i64: 1>, scalar_prefetch = 0 : i64, scratch_operands = 0 : i64, tpu.core_type = #tpu.core_type<tc>, window_params = [{transform_indices = @transform_0, window_bounds = array<i64: 8, 32>}, {transform_indices = @transform_1, window_bounds = array<i64: 8, 1>}, {transform_indices = @transform_2, window_bounds = array<i64: 8, 1>}]} {
    %c0 = arith.constant 0 : index
    %c0_0 = arith.constant 0 : index
    %0 = vector.load %arg1[%c0, %c0_0] : memref<8x32xf32, #tpu.memory_space<vmem>>, vector<8x32xf32>
    %c0_1 = arith.constant 0 : index
    %c0_2 = arith.constant 0 : index
    %1 = vector.load %arg2[%c0_1, %c0_2] : memref<8x1xi32, #tpu.memory_space<vmem>>, vector<8x1xi32>
    %cst = arith.constant dense<0xFF800000> : vector<8xf32>
    %2 = vector.multi_reduction <maximumf>, %0, %cst [1] : vector<8x32xf32> to vector<8xf32>
    %3 = vector.shape_cast %2 : vector<8xf32> to vector<8x1xf32>
    %4 = vector.broadcast %3 : vector<8x1xf32> to vector<8x32xf32>
    %5 = arith.subf %0, %4 : vector<8x32xf32>
    %6 = math.exp %5 : vector<8x32xf32>
    %cst_3 = arith.constant dense<0.000000e+00> : vector<8xf32>
    %7 = vector.multi_reduction <add>, %6, %cst_3 [1] : vector<8x32xf32> to vector<8xf32>
    %8 = vector.shape_cast %7 : vector<8xf32> to vector<8x1xf32>
    %9 = math.log %8 : vector<8x1xf32>
    %10 = vector.broadcast %9 : vector<8x1xf32> to vector<8x32xf32>
    %11 = arith.subf %5, %10 : vector<8x32xf32>
    %12 = tpu.iota {dimensions = array<i32: 1>} : vector<8x32xi32>
    %cst_4 = arith.constant dense<0.000000e+00> : vector<8xf32>
    %13 = vector.multi_reduction <add>, %11, %cst_4 [1] : vector<8x32xf32> to vector<8xf32>
    %14 = vector.shape_cast %13 : vector<8xf32> to vector<8x1xf32>
    %15 = vector.broadcast %1 : vector<8x1xi32> to vector<8x32xi32>
    %16 = arith.cmpi eq, %12, %15 : vector<8x32xi32>
    %cst_5 = arith.constant 0.000000e+00 : f32
    %17 = vector.broadcast %cst_5 : f32 to vector<8x32xf32>
    %18 = arith.select %16, %11, %17 : vector<8x32xi1>, vector<8x32xf32>
    %cst_6 = arith.constant dense<0.000000e+00> : vector<8xf32>
    %19 = vector.multi_reduction <add>, %18, %cst_6 [1] : vector<8x32xf32> to vector<8xf32>
    %20 = vector.shape_cast %19 : vector<8xf32> to vector<8x1xf32>
    %cst_7 = arith.constant 0.0032258064 : f32
    %21 = vector.broadcast %cst_7 : f32 to vector<8x1xf32>
    %22 = arith.mulf %21, %14 : vector<8x1xf32>
    %cst_8 = arith.constant 0.896774172 : f32
    %23 = vector.broadcast %cst_8 : f32 to vector<8x1xf32>
    %24 = arith.mulf %23, %20 : vector<8x1xf32>
    %25 = arith.addf %22, %24 : vector<8x1xf32>
    %cst_9 = arith.constant 0.000000e+00 : f32
    %26 = vector.broadcast %cst_9 : f32 to vector<8x1xf32>
    %27 = arith.subf %26, %25 : vector<8x1xf32>
    %c0_10 = arith.constant 0 : index
    %c0_11 = arith.constant 0 : index
    %28 = vector.load %arg3[%c0_10, %c0_11] : memref<8x1xf32, #tpu.memory_space<vmem>>, vector<8x1xf32>
    tpu.vector_store %arg3[%c0_10, %c0_11], %27 {strides = array<i32>} : memref<8x1xf32, #tpu.memory_space<vmem>>, vector<8x1xf32>,
    return
  }
  func.func @transform_0(%arg0: i32) -> (i32, i32) {
    %c0_i32 = arith.constant 0 : i32
    %c0_i32_0 = arith.constant 0 : i32
    return %arg0, %c0_i32 : i32, i32
  }
  func.func @transform_1(%arg0: i32) -> (i32, i32) {
    %c0_i32 = arith.constant 0 : i32
    %c0_i32_0 = arith.constant 0 : i32
    return %arg0, %c0_i32 : i32, i32
  }
  func.func @transform_2(%arg0: i32) -> (i32, i32) {
    %c0_i32 = arith.constant 0 : i32
    %c0_i32_0 = arith.constant 0 : i32
    return %arg0, %c0_i32 : i32, i32
  }
}

</mosaic_0001>

<llo_original>
// kernel: tpu_custom_call.1
$region0: #{tpu_custom_call.1}
  #allocation0 [shape = 'u32[]', space=smem, size = 0x4, offset = 0x4, fixed_abs, tag = 'smem constant byte address 0x4 - core index']
  #allocation1 [shape = 'u32[72,128]{1,0:T(1,128)}', space=vmem, size = 0x9000, scoped, tag = 'internal scratch']
  %s0 = inlined_call_operand.vmem [shape: f32[8,32], index: 0, kind: input, shape index: {}]
  %s1 = inlined_call_operand.vmem [shape: s32[8,1], index: 1, kind: input, shape index: {}]
  %s2 = inlined_call_operand.vmem [shape: f32[8,1], index: 2, kind: output, shape index: {}]
  %s3 = sld [smem:[#allocation0]]
  $region18: #{tpu_custom_call.1} parent=0
    _
  %s5 = ssub.s32 1, %s3
  %s6 = scalar_select 0, %s5, %s3
  // Predicated region
  $region2: #{tpu_custom_call.1} parent=0 // pred_check
    _
  $region3: #{tpu_custom_call.1} parent=0 // pred_check_branch
    %8 = sbr.rel (0) target = $region5
  $region4: #{tpu_custom_call.1} parent=0 // pred_region
    _
  $region5: #{tpu_custom_call.1} parent=0 // pred_fallthru
    _
  // Predicated region
  $region6: #{tpu_custom_call.1} parent=0 // pred_check
    _
  $region7: #{tpu_custom_call.1} parent=0 // pred_check_branch
    %10 = sbr.rel (0) target = $region9
  $region8: #{tpu_custom_call.1} parent=0 // pred_region
    _
  $region9: #{tpu_custom_call.1} parent=0 // pred_fallthru
    _
  %v11 = vld [vmem:[%s0] sm:$0xff]
  %v12 = vld [vmem:[%s1] sm:$0xff]
  %vm13 = vcmask 261120
  %v14 = vsel %vm13, %v11, -inf
  %15 = vmax.xlane.f32.xlu0 %v14
  %v16 = vpop.xlane.xlu0 %15
  %v17 = vsub.f32 %v11, %v16
  %v18 = vmul.f32 %v17, 1.442695
  %v19 = vpow.pop %v18
  %v20 = vsel %vm13, %v19, 0.0
  %21 = vadd.xlane.f32.xlu0 %v20
  %v22 = vpop.xlane.xlu0 %21
  %v23 = vlog2.pop %v22
  %v24 = vmul.f32 %v23, 0.6931472
  %v25 = vsub.f32 %v17, %v24
  %v26 = vlaneseq
  %v27 = vand.u32 %v26, 127
  %v28 = vsel %vm13, %v25, 0.0
  %29 = vadd.xlane.f32.xlu0 %v28
  %v30 = vpop.xlane.xlu0 %29
  %31 = vset.pattern.permute.xlu0 0
  %32 = vperm.xlu0 %31, %v12
  %v33 = vpop.permute.xlu0 %32
  %vm34 = vcmp.eq.s32.totalorder %v27, %v33
  %v35 = vsel %vm34, %v25, 0.0
  %v36 = vsel %vm13, %v35, 0.0
  %37 = vadd.xlane.f32.xlu0 %v36
  %v38 = vpop.xlane.xlu0 %37
  %v39 = vmul.f32 %v30, 0.0032258064
  %v40 = vmul.f32 %v38, 0.8967742
  %v41 = vadd.f32 %v39, %v40
  %v42 = vsub.f32 0.0, %v41
  %vm43 = vcmask 7168
  %44 = vst.msk [vmem:[%s2] sm:$0xff] %vm43, %v42
  // Predicated region
  $region10: #{tpu_custom_call.1} parent=0 // pred_check
    _
  $region11: #{tpu_custom_call.1} parent=0 // pred_check_branch
    %46 = sbr.rel (0) target = $region13
  $region12: #{tpu_custom_call.1} parent=0 // pred_region
    _
  $region13: #{tpu_custom_call.1} parent=0 // pred_fallthru
    _
  // Predicated region
  $region14: #{tpu_custom_call.1} parent=0 // pred_check
    _
  $region15: #{tpu_custom_call.1} parent=0 // pred_check_branch
    %48 = sbr.rel (0) target = $region17
  $region16: #{tpu_custom_call.1} parent=0 // pred_region
    _
  $region17: #{tpu_custom_call.1} parent=0 // pred_fallthru
    _

</llo_original>
